<compile_context>
chip_gen: v6e
topology: v6e:2x2x1
jax: 0.10.0
libtpu: 0.0.40
codegen_flags: <defaults>
</compile_context>

<pallas_src>
import jax
import jax.numpy as jnp
from jax.experimental import pallas as pl
from jax.experimental.pallas import tpu as pltpu


def _round_up(x, m):
    return ((x + m - 1) // m) * m


def _elu(x):
    # ELU(alpha=1): x if x > 0 else exp(x) - 1   (clamp exp arg for safety)
    return jnp.where(x > 0, x, jnp.exp(jnp.minimum(x, 0.0)) - 1.0)


def _make_kernel(g_pad, d2):
    small_g = g_pad <= 16  # masked VPU adds when few graphs; one-hot matmul otherwise

    def kernel(batch_ref, x_ref, w1_ref, b1_ref, w2_ref, b2_ref, wc_ref, bc_ref,
               y_ref, acc_ref, cnt_ref):
        step = pl.program_id(0)

        @pl.when(step == 0)
        def _init():
            acc_ref[...] = jnp.zeros_like(acc_ref)
            cnt_ref[...] = jnp.zeros_like(cnt_ref)

        x = x_ref[...]                                                 # (tile_n, dim_in) bf16

        # layer1 + ELU  (F.dropout is identity in eval mode)
        h = jnp.dot(x, w1_ref[...], preferred_element_type=jnp.float32) + b1_ref[...]
        h = _elu(h)                                                    # (tile_n, d1) f32

        # layer2 + ELU
        h = jnp.dot(h.astype(w2_ref.dtype), w2_ref[...],
                    preferred_element_type=jnp.float32) + b2_ref[...]
        h = _elu(h)                                                    # (tile_n, d2) f32

        b = batch_ref[...]                                             # (tile_n, 1) int32, pad rows = -1

        # segment-sum pool accumulation (replaces the dense (G, N) pool matmul)
        if small_g:
            rows, cnts = [], []
            for g in range(g_pad):
                m = (b == g)                                           # (tile_n, 1) bool
                rows.append(jnp.sum(jnp.where(m, h, 0.0), axis=0, keepdims=True))
                cnts.append(jnp.sum(m.astype(jnp.float32), axis=0, keepdims=True))
            acc_ref[...] += jnp.concatenate(rows, axis=0)              # (g_pad, d2)
            cnt_ref[...] += jnp.concatenate(cnts, axis=0)              # (g_pad, 1)
        else:
            onehot = (b == jax.lax.broadcasted_iota(
                jnp.int32, (b.shape[0], g_pad), 1)).astype(jnp.float32)  # (tile_n, g_pad)
            dims = (((0,), (0,)), ((), ()))                            # contract node axis
            acc_ref[...] += jax.lax.dot_general(
                onehot, h, dims, preferred_element_type=jnp.float32)
            cnt_ref[...] += jax.lax.dot_general(
                onehot, jnp.ones((b.shape[0], 1), jnp.float32), dims,
                preferred_element_type=jnp.float32)

        # epilogue: mean, classifier, softmax — tiny, done once on the last tile
        @pl.when(step == pl.num_programs(0) - 1)
        def _finalize():
            hg = acc_ref[...] / jnp.maximum(cnt_ref[...], 1.0)         # (g_pad, d2)
            logits = jnp.dot(hg, wc_ref[...],
                             preferred_element_type=jnp.float32) + bc_ref[...]
            mx = jnp.max(logits, axis=-1, keepdims=True)
            e = jnp.exp(logits - mx)
            y_ref[...] = e / jnp.sum(e, axis=-1, keepdims=True)        # (g_pad, 2)

    return kernel


def nograph_forward(x, batch, num_graphs, params, *, tile_n=512):
    """x: (N, dim_in) f32, batch: (N,) int graph id per node."""
    N, dim_in = x.shape
    G = int(num_graphs)
    w1, b1, w2, b2, wc, bc = params
    d1, d2 = w1.shape[1], w2.shape[1]

    g_pad = _round_up(max(G, 1), 8)
    tile_n = min(int(tile_n), _round_up(N, 8))
    tile_n = max(8, _round_up(tile_n, 8))
    n_pad = _round_up(N, tile_n)

    # Pad the node dimension to a tile multiple; padded rows get batch id -1 so
    # they contribute nothing to the pooled sums / counts.
    x_p = jnp.zeros((n_pad, dim_in), jnp.bfloat16).at[:N].set(x.astype(jnp.bfloat16))
    batch_p = jnp.full((n_pad, 1), -1, jnp.int32).at[:N, 0].set(batch.astype(jnp.int32))

    # bf16 matmul operands (f32 accumulation inside the kernel); biases stay f32.
    w1b = w1.astype(jnp.bfloat16)
    w2b = w2.astype(jnp.bfloat16)

    def resident(shape):
        nd = len(shape)
        return pl.BlockSpec(shape, lambda i, _nd=nd: (0,) * _nd)

    kernel = _make_kernel(g_pad, d2)
    grid = (n_pad // tile_n,)

    y = pl.pallas_call(
        kernel,
        out_shape=jax.ShapeDtypeStruct((g_pad, 2), jnp.float32),
        grid_spec=pltpu.PrefetchScalarGridSpec(
            num_scalar_prefetch=0,
            grid=grid,
            in_specs=[
                pl.BlockSpec((tile_n, 1), lambda i: (i, 0)),       # batch ids (streamed)
                pl.BlockSpec((tile_n, dim_in), lambda i: (i, 0)),  # x          (streamed)
                resident((dim_in, d1)),                            # w1 (bf16, resident)
                resident((1, d1)),                                 # b1
                resident((d1, d2)),                                # w2 (bf16, resident)
                resident((1, d2)),                                 # b2
                resident((d2, 2)),                                 # wc
                resident((1, 2)),                                  # bc
            ],
            out_specs=pl.BlockSpec((g_pad, 2), lambda i: (0, 0)),
            scratch_shapes=[
                pltpu.VMEM((g_pad, d2), jnp.float32),              # pooled sums
                pltpu.VMEM((g_pad, 1), jnp.float32),               # per-graph counts
            ],
        ),
        compiler_params=pltpu.CompilerParams(
            dimension_semantics=("arbitrary",),                    # reduction over node tiles
            vmem_limit_bytes=32 * 1024 * 1024,
        ),
    )(batch_p, x_p, w1b, b1, w2b, b2, wc, bc)
    return y[:G]


def init_params(key, dim_in, dim_h, heads, heads2):
    """Deterministic parameter init. Weights stored as (in, out)."""
    d1, d2 = dim_h * heads, dim_h * heads2
    ks = jax.random.split(key, 6)
    w1 = jax.random.normal(ks[0], (dim_in, d1), jnp.float32) * 0.1
    b1 = jax.random.normal(ks[1], (1, d1), jnp.float32) * 0.01
    w2 = jax.random.normal(ks[2], (d1, d2), jnp.float32) * 0.1
    b2 = jax.random.normal(ks[3], (1, d2), jnp.float32) * 0.01
    wc = jax.random.normal(ks[4], (d2, 2), jnp.float32) * 0.1
    bc = jax.random.normal(ks[5], (1, 2), jnp.float32) * 0.01
    return (w1, b1, w2, b2, wc, bc)


def _reference(x, batch, num_graphs, params):
    # Pure-JAX f32 reference (same math) for a sanity check.
    w1, b1, w2, b2, wc, bc = params
    h = _elu(x @ w1 + b1)
    h = _elu(h @ w2 + b2)
    G = int(num_graphs)
    onehot = (batch[None, :] == jnp.arange(G, dtype=batch.dtype)[:, None]).astype(jnp.float32)
    pool = onehot / jnp.maximum(onehot.sum(axis=1, keepdims=True), 1.0)
    hg = pool @ h
    logits = hg @ wc + bc
    return jax.nn.softmax(logits, axis=-1)


if __name__ == "__main__":
    # Small shapes consistent with the module: dim_in=32, dim_h=16, heads=4, heads2=2
    #  -> layer1: 32 -> 64, layer2: 64 -> 32, classifier: 32 -> 2
    dim_in, dim_h, heads, heads2 = 32, 16, 4, 2
    N, G = 50, 2                                   # 50 nodes across 2 graphs

    key = jax.random.PRNGKey(0)
    kx, kp = jax.random.split(key)
    x = jax.random.normal(kx, (N, dim_in), jnp.float32)
    # uneven graph sizes: first 21 nodes in graph 0, remaining 29 in graph 1
    batch = jnp.concatenate([jnp.zeros((21,), jnp.int32), jnp.ones((29,), jnp.int32)])
    params = init_params(kp, dim_in, dim_h, heads, heads2)

    # tile_n=16 forces 4 grid steps over the padded 64-row node array, exercising
    # the accumulator, multi-tile pipelining, and padded-row masking.  Realistic
    # node counts use the 512-row default tile.
    # TODO(synk): dropout is a no-op in eval mode; training-mode dropout (RNG masks) not implemented.
    y = nograph_forward(x, batch, G, params, tile_n=16)
    jax.block_until_ready(y)

    y_ref = _reference(x, batch, G, params)
    assert y.shape == (G, 2)
    # bf16 matmul operands -> loosened tolerance vs the f32 reference.
    assert jnp.allclose(y, y_ref, atol=2e-2), (y, y_ref)
    assert jnp.allclose(jnp.sum(y, axis=-1), 1.0, atol=1e-3)
    print("KERNEL_OK")
</pallas_src>

<mosaic_0001>
module attributes {stable_mosaic.version = 11 : i64} {
  func.func @kernel(%arg0: i32, %arg1: memref<16x1xi32, #tpu.memory_space<vmem>>, %arg2: memref<16x32xbf16, #tpu.memory_space<vmem>>, %arg3: memref<32x64xbf16, #tpu.memory_space<vmem>>, %arg4: memref<1x64xf32, #tpu.memory_space<vmem>>, %arg5: memref<64x32xbf16, #tpu.memory_space<vmem>>, %arg6: memref<1x32xf32, #tpu.memory_space<vmem>>, %arg7: memref<32x2xf32, #tpu.memory_space<vmem>>, %arg8: memref<1x2xf32, #tpu.memory_space<vmem>>, %arg9: memref<8x2xf32, #tpu.memory_space<vmem>>, %arg10: memref<8x32xf32, #tpu.memory_space<vmem>>, %arg11: memref<8x1xf32, #tpu.memory_space<vmem>>) attributes {dimension_semantics = [#tpu.dimension_semantics<arbitrary>], iteration_bounds = array<i64: 4>, scalar_prefetch = 0 : i64, scratch_operands = 2 : i64, tpu.core_type = #tpu.core_type<tc>, window_params = [{transform_indices = @transform_0, window_bounds = array<i64: 16, 1>}, {transform_indices = @transform_1, window_bounds = array<i64: 16, 32>}, {pipeline_mode = #tpu.pipeline_mode<synchronous>, transform_indices = @transform_2, window_bounds = array<i64: 32, 64>}, {pipeline_mode = #tpu.pipeline_mode<synchronous>, transform_indices = @transform_3, window_bounds = array<i64: 1, 64>}, {pipeline_mode = #tpu.pipeline_mode<synchronous>, transform_indices = @transform_4, window_bounds = array<i64: 64, 32>}, {pipeline_mode = #tpu.pipeline_mode<synchronous>, transform_indices = @transform_5, window_bounds = array<i64: 1, 32>}, {pipeline_mode = #tpu.pipeline_mode<synchronous>, transform_indices = @transform_6, window_bounds = array<i64: 32, 2>}, {pipeline_mode = #tpu.pipeline_mode<synchronous>, transform_indices = @transform_7, window_bounds = array<i64: 1, 2>}, {pipeline_mode = #tpu.pipeline_mode<synchronous>, transform_indices = @transform_8, window_bounds = array<i64: 8, 2>}]} {
    %c0_i32 = arith.constant 0 : i32
    %0 = arith.cmpi eq, %arg0, %c0_i32 : i32
    %1 = arith.extui %0 : i1 to i32
    %c0_i32_0 = arith.constant 0 : i32
    %2 = arith.cmpi ne, %1, %c0_i32_0 : i32
    scf.if %2 {
      %cst_54 = arith.constant 0.000000e+00 : f32
      %139 = vector.broadcast %cst_54 : f32 to vector<8x32xf32>
      %c0_55 = arith.constant 0 : index
      %c0_56 = arith.constant 0 : index
      %140 = vector.load %arg10[%c0_55, %c0_56] : memref<8x32xf32, #tpu.memory_space<vmem>>, vector<8x32xf32>
      tpu.vector_store %arg10[%c0_55, %c0_56], %139 {strides = array<i32>} : memref<8x32xf32, #tpu.memory_space<vmem>>, vector<8x32xf32>,
      %cst_57 = arith.constant 0.000000e+00 : f32
      %141 = vector.broadcast %cst_57 : f32 to vector<8x1xf32>
      %c0_58 = arith.constant 0 : index
      %c0_59 = arith.constant 0 : index
      %142 = vector.load %arg11[%c0_58, %c0_59] : memref<8x1xf32, #tpu.memory_space<vmem>>, vector<8x1xf32>
      tpu.vector_store %arg11[%c0_58, %c0_59], %141 {strides = array<i32>} : memref<8x1xf32, #tpu.memory_space<vmem>>, vector<8x1xf32>,
    } else {
    }
    %c0 = arith.constant 0 : index
    %c0_1 = arith.constant 0 : index
    %3 = vector.load %arg2[%c0, %c0_1] : memref<16x32xbf16, #tpu.memory_space<vmem>>, vector<16x32xbf16>
    %c0_2 = arith.constant 0 : index
    %c0_3 = arith.constant 0 : index
    %4 = vector.load %arg3[%c0_2, %c0_3] : memref<32x64xbf16, #tpu.memory_space<vmem>>, vector<32x64xbf16>
    %cst = arith.constant dense<0.000000e+00> : vector<16x64xf32>
    %5 = tpu.matmul %3, %4, %cst {dimension_numbers = #tpu.dot_dimension_numbers<[1], [0], [0], [1], [0, 0, 1, 1], [], []>} : vector<16x32xbf16>, vector<32x64xbf16>, vector<16x64xf32> -> vector<16x64xf32>
    %c0_4 = arith.constant 0 : index
    %c0_5 = arith.constant 0 : index
    %6 = vector.load %arg4[%c0_4, %c0_5] : memref<1x64xf32, #tpu.memory_space<vmem>>, vector<1x64xf32>
    %7 = vector.broadcast %6 : vector<1x64xf32> to vector<16x64xf32>
    %8 = arith.addf %5, %7 : vector<16x64xf32>
    %cst_6 = arith.constant 0.000000e+00 : f32
    %9 = vector.broadcast %cst_6 : f32 to vector<16x64xf32>
    %10 = arith.cmpf ogt, %8, %9 : vector<16x64xf32>
    %cst_7 = arith.constant 0.000000e+00 : f32
    %11 = vector.broadcast %cst_7 : f32 to vector<16x64xf32>
    %12 = arith.minimumf %8, %11 : vector<16x64xf32>
    %13 = math.exp %12 : vector<16x64xf32>
    %cst_8 = arith.constant 1.000000e+00 : f32
    %14 = vector.broadcast %cst_8 : f32 to vector<16x64xf32>
    %15 = arith.subf %13, %14 : vector<16x64xf32>
    %16 = arith.select %10, %8, %15 : vector<16x64xi1>, vector<16x64xf32>
    %17 = arith.truncf %16 : vector<16x64xf32> to vector<16x64xbf16>
    %c0_9 = arith.constant 0 : index
    %c0_10 = arith.constant 0 : index
    %18 = vector.load %arg5[%c0_9, %c0_10] : memref<64x32xbf16, #tpu.memory_space<vmem>>, vector<64x32xbf16>
    %cst_11 = arith.constant dense<0.000000e+00> : vector<16x32xf32>
    %19 = tpu.matmul %17, %18, %cst_11 {dimension_numbers = #tpu.dot_dimension_numbers<[1], [0], [0], [1], [0, 0, 1, 1], [], []>} : vector<16x64xbf16>, vector<64x32xbf16>, vector<16x32xf32> -> vector<16x32xf32>
    %c0_12 = arith.constant 0 : index
    %c0_13 = arith.constant 0 : index
    %20 = vector.load %arg6[%c0_12, %c0_13] : memref<1x32xf32, #tpu.memory_space<vmem>>, vector<1x32xf32>
    %21 = vector.broadcast %20 : vector<1x32xf32> to vector<16x32xf32>
    %22 = arith.addf %19, %21 : vector<16x32xf32>
    %cst_14 = arith.constant 0.000000e+00 : f32
    %23 = vector.broadcast %cst_14 : f32 to vector<16x32xf32>
    %24 = arith.cmpf ogt, %22, %23 : vector<16x32xf32>
    %cst_15 = arith.constant 0.000000e+00 : f32
    %25 = vector.broadcast %cst_15 : f32 to vector<16x32xf32>
    %26 = arith.minimumf %22, %25 : vector<16x32xf32>
    %27 = math.exp %26 : vector<16x32xf32>
    %cst_16 = arith.constant 1.000000e+00 : f32
    %28 = vector.broadcast %cst_16 : f32 to vector<16x32xf32>
    %29 = arith.subf %27, %28 : vector<16x32xf32>
    %30 = arith.select %24, %22, %29 : vector<16x32xi1>, vector<16x32xf32>
    %c0_17 = arith.constant 0 : index
    %c0_18 = arith.constant 0 : index
    %31 = vector.load %arg1[%c0_17, %c0_18] : memref<16x1xi32, #tpu.memory_space<vmem>>, vector<16x1xi32>
    %c0_i32_19 = arith.constant 0 : i32
    %32 = vector.broadcast %c0_i32_19 : i32 to vector<16x1xi32>
    %33 = arith.cmpi eq, %31, %32 : vector<16x1xi32>
    %cst_20 = arith.constant 0.000000e+00 : f32
    %34 = vector.shape_cast %33 : vector<16x1xi1> to vector<16x1xi1>
    %35 = vector.broadcast %34 : vector<16x1xi1> to vector<16x32xi1>
    %36 = vector.broadcast %cst_20 : f32 to vector<16x32xf32>
    %37 = arith.select %35, %30, %36 : vector<16x32xi1>, vector<16x32xf32>
    %cst_21 = arith.constant dense<0.000000e+00> : vector<32xf32>
    %38 = vector.multi_reduction <add>, %37, %cst_21 [0] : vector<16x32xf32> to vector<32xf32>
    %39 = vector.shape_cast %38 : vector<32xf32> to vector<1x32xf32>
    %40 = arith.extui %33 : vector<16x1xi1> to vector<16x1xi32>
    %41 = arith.sitofp %40 : vector<16x1xi32> to vector<16x1xf32>
    %cst_22 = arith.constant dense<0.000000e+00> : vector<1xf32>
    %42 = vector.multi_reduction <add>, %41, %cst_22 [0] : vector<16x1xf32> to vector<1xf32>
    %43 = vector.shape_cast %42 : vector<1xf32> to vector<1x1xf32>
    %c1_i32 = arith.constant 1 : i32
    %44 = vector.broadcast %c1_i32 : i32 to vector<16x1xi32>
    %45 = arith.cmpi eq, %31, %44 : vector<16x1xi32>
    %cst_23 = arith.constant 0.000000e+00 : f32
    %46 = vector.shape_cast %45 : vector<16x1xi1> to vector<16x1xi1>
    %47 = vector.broadcast %46 : vector<16x1xi1> to vector<16x32xi1>
    %48 = vector.broadcast %cst_23 : f32 to vector<16x32xf32>
    %49 = arith.select %47, %30, %48 : vector<16x32xi1>, vector<16x32xf32>
    %cst_24 = arith.constant dense<0.000000e+00> : vector<32xf32>
    %50 = vector.multi_reduction <add>, %49, %cst_24 [0] : vector<16x32xf32> to vector<32xf32>
    %51 = vector.shape_cast %50 : vector<32xf32> to vector<1x32xf32>
    %52 = arith.extui %45 : vector<16x1xi1> to vector<16x1xi32>
    %53 = arith.sitofp %52 : vector<16x1xi32> to vector<16x1xf32>
    %cst_25 = arith.constant dense<0.000000e+00> : vector<1xf32>
    %54 = vector.multi_reduction <add>, %53, %cst_25 [0] : vector<16x1xf32> to vector<1xf32>
    %55 = vector.shape_cast %54 : vector<1xf32> to vector<1x1xf32>
    %c2_i32 = arith.constant 2 : i32
    %56 = vector.broadcast %c2_i32 : i32 to vector<16x1xi32>
    %57 = arith.cmpi eq, %31, %56 : vector<16x1xi32>
    %cst_26 = arith.constant 0.000000e+00 : f32
    %58 = vector.shape_cast %57 : vector<16x1xi1> to vector<16x1xi1>
    %59 = vector.broadcast %58 : vector<16x1xi1> to vector<16x32xi1>
    %60 = vector.broadcast %cst_26 : f32 to vector<16x32xf32>
    %61 = arith.select %59, %30, %60 : vector<16x32xi1>, vector<16x32xf32>
    %cst_27 = arith.constant dense<0.000000e+00> : vector<32xf32>
    %62 = vector.multi_reduction <add>, %61, %cst_27 [0] : vector<16x32xf32> to vector<32xf32>
    %63 = vector.shape_cast %62 : vector<32xf32> to vector<1x32xf32>
    %64 = arith.extui %57 : vector<16x1xi1> to vector<16x1xi32>
    %65 = arith.sitofp %64 : vector<16x1xi32> to vector<16x1xf32>
    %cst_28 = arith.constant dense<0.000000e+00> : vector<1xf32>
    %66 = vector.multi_reduction <add>, %65, %cst_28 [0] : vector<16x1xf32> to vector<1xf32>
    %67 = vector.shape_cast %66 : vector<1xf32> to vector<1x1xf32>
    %c3_i32 = arith.constant 3 : i32
    %68 = vector.broadcast %c3_i32 : i32 to vector<16x1xi32>
    %69 = arith.cmpi eq, %31, %68 : vector<16x1xi32>
    %cst_29 = arith.constant 0.000000e+00 : f32
    %70 = vector.shape_cast %69 : vector<16x1xi1> to vector<16x1xi1>
    %71 = vector.broadcast %70 : vector<16x1xi1> to vector<16x32xi1>
    %72 = vector.broadcast %cst_29 : f32 to vector<16x32xf32>
    %73 = arith.select %71, %30, %72 : vector<16x32xi1>, vector<16x32xf32>
    %cst_30 = arith.constant dense<0.000000e+00> : vector<32xf32>
    %74 = vector.multi_reduction <add>, %73, %cst_30 [0] : vector<16x32xf32> to vector<32xf32>
    %75 = vector.shape_cast %74 : vector<32xf32> to vector<1x32xf32>
    %76 = arith.extui %69 : vector<16x1xi1> to vector<16x1xi32>
    %77 = arith.sitofp %76 : vector<16x1xi32> to vector<16x1xf32>
    %cst_31 = arith.constant dense<0.000000e+00> : vector<1xf32>
    %78 = vector.multi_reduction <add>, %77, %cst_31 [0] : vector<16x1xf32> to vector<1xf32>
    %79 = vector.shape_cast %78 : vector<1xf32> to vector<1x1xf32>
    %c4_i32 = arith.constant 4 : i32
    %80 = vector.broadcast %c4_i32 : i32 to vector<16x1xi32>
    %81 = arith.cmpi eq, %31, %80 : vector<16x1xi32>
    %cst_32 = arith.constant 0.000000e+00 : f32
    %82 = vector.shape_cast %81 : vector<16x1xi1> to vector<16x1xi1>
    %83 = vector.broadcast %82 : vector<16x1xi1> to vector<16x32xi1>
    %84 = vector.broadcast %cst_32 : f32 to vector<16x32xf32>
    %85 = arith.select %83, %30, %84 : vector<16x32xi1>, vector<16x32xf32>
    %cst_33 = arith.constant dense<0.000000e+00> : vector<32xf32>
    %86 = vector.multi_reduction <add>, %85, %cst_33 [0] : vector<16x32xf32> to vector<32xf32>
    %87 = vector.shape_cast %86 : vector<32xf32> to vector<1x32xf32>
    %88 = arith.extui %81 : vector<16x1xi1> to vector<16x1xi32>
    %89 = arith.sitofp %88 : vector<16x1xi32> to vector<16x1xf32>
    %cst_34 = arith.constant dense<0.000000e+00> : vector<1xf32>
    %90 = vector.multi_reduction <add>, %89, %cst_34 [0] : vector<16x1xf32> to vector<1xf32>
    %91 = vector.shape_cast %90 : vector<1xf32> to vector<1x1xf32>
    %c5_i32 = arith.constant 5 : i32
    %92 = vector.broadcast %c5_i32 : i32 to vector<16x1xi32>
    %93 = arith.cmpi eq, %31, %92 : vector<16x1xi32>
    %cst_35 = arith.constant 0.000000e+00 : f32
    %94 = vector.shape_cast %93 : vector<16x1xi1> to vector<16x1xi1>
    %95 = vector.broadcast %94 : vector<16x1xi1> to vector<16x32xi1>
    %96 = vector.broadcast %cst_35 : f32 to vector<16x32xf32>
    %97 = arith.select %95, %30, %96 : vector<16x32xi1>, vector<16x32xf32>
    %cst_36 = arith.constant dense<0.000000e+00> : vector<32xf32>
    %98 = vector.multi_reduction <add>, %97, %cst_36 [0] : vector<16x32xf32> to vector<32xf32>
    %99 = vector.shape_cast %98 : vector<32xf32> to vector<1x32xf32>
    %100 = arith.extui %93 : vector<16x1xi1> to vector<16x1xi32>
    %101 = arith.sitofp %100 : vector<16x1xi32> to vector<16x1xf32>
    %cst_37 = arith.constant dense<0.000000e+00> : vector<1xf32>
    %102 = vector.multi_reduction <add>, %101, %cst_37 [0] : vector<16x1xf32> to vector<1xf32>
    %103 = vector.shape_cast %102 : vector<1xf32> to vector<1x1xf32>
    %c6_i32 = arith.constant 6 : i32
    %104 = vector.broadcast %c6_i32 : i32 to vector<16x1xi32>
    %105 = arith.cmpi eq, %31, %104 : vector<16x1xi32>
    %cst_38 = arith.constant 0.000000e+00 : f32
    %106 = vector.shape_cast %105 : vector<16x1xi1> to vector<16x1xi1>
    %107 = vector.broadcast %106 : vector<16x1xi1> to vector<16x32xi1>
    %108 = vector.broadcast %cst_38 : f32 to vector<16x32xf32>
    %109 = arith.select %107, %30, %108 : vector<16x32xi1>, vector<16x32xf32>
    %cst_39 = arith.constant dense<0.000000e+00> : vector<32xf32>
    %110 = vector.multi_reduction <add>, %109, %cst_39 [0] : vector<16x32xf32> to vector<32xf32>
    %111 = vector.shape_cast %110 : vector<32xf32> to vector<1x32xf32>
    %112 = arith.extui %105 : vector<16x1xi1> to vector<16x1xi32>
    %113 = arith.sitofp %112 : vector<16x1xi32> to vector<16x1xf32>
    %cst_40 = arith.constant dense<0.000000e+00> : vector<1xf32>
    %114 = vector.multi_reduction <add>, %113, %cst_40 [0] : vector<16x1xf32> to vector<1xf32>
    %115 = vector.shape_cast %114 : vector<1xf32> to vector<1x1xf32>
    %c7_i32 = arith.constant 7 : i32
    %116 = vector.broadcast %c7_i32 : i32 to vector<16x1xi32>
    %117 = arith.cmpi eq, %31, %116 : vector<16x1xi32>
    %cst_41 = arith.constant 0.000000e+00 : f32
    %118 = vector.shape_cast %117 : vector<16x1xi1> to vector<16x1xi1>
    %119 = vector.broadcast %118 : vector<16x1xi1> to vector<16x32xi1>
    %120 = vector.broadcast %cst_41 : f32 to vector<16x32xf32>
    %121 = arith.select %119, %30, %120 : vector<16x32xi1>, vector<16x32xf32>
    %cst_42 = arith.constant dense<0.000000e+00> : vector<32xf32>
    %122 = vector.multi_reduction <add>, %121, %cst_42 [0] : vector<16x32xf32> to vector<32xf32>
    %123 = vector.shape_cast %122 : vector<32xf32> to vector<1x32xf32>
    %124 = arith.extui %117 : vector<16x1xi1> to vector<16x1xi32>
    %125 = arith.sitofp %124 : vector<16x1xi32> to vector<16x1xf32>
    %cst_43 = arith.constant dense<0.000000e+00> : vector<1xf32>
    %126 = vector.multi_reduction <add>, %125, %cst_43 [0] : vector<16x1xf32> to vector<1xf32>
    %127 = vector.shape_cast %126 : vector<1xf32> to vector<1x1xf32>
    %c0_44 = arith.constant 0 : index
    %c0_45 = arith.constant 0 : index
    %128 = vector.load %arg10[%c0_44, %c0_45] : memref<8x32xf32, #tpu.memory_space<vmem>>, vector<8x32xf32>
    %129 = tpu.concatenate %39, %51, %63, %75, %87, %99, %111, %123 in 0 : vector<1x32xf32>, vector<1x32xf32>, vector<1x32xf32>, vector<1x32xf32>, vector<1x32xf32>, vector<1x32xf32>, vector<1x32xf32>, vector<1x32xf32> -> vector<8x32xf32>
    %130 = arith.addf %128, %129 : vector<8x32xf32>
    %c0_46 = arith.constant 0 : index
    %c0_47 = arith.constant 0 : index
    %131 = vector.load %arg10[%c0_46, %c0_47] : memref<8x32xf32, #tpu.memory_space<vmem>>, vector<8x32xf32>
    tpu.vector_store %arg10[%c0_46, %c0_47], %130 {strides = array<i32>} : memref<8x32xf32, #tpu.memory_space<vmem>>, vector<8x32xf32>,
    %c0_48 = arith.constant 0 : index
    %c0_49 = arith.constant 0 : index
    %132 = vector.load %arg11[%c0_48, %c0_49] : memref<8x1xf32, #tpu.memory_space<vmem>>, vector<8x1xf32>
    %133 = tpu.concatenate %43, %55, %67, %79, %91, %103, %115, %127 in 0 : vector<1x1xf32>, vector<1x1xf32>, vector<1x1xf32>, vector<1x1xf32>, vector<1x1xf32>, vector<1x1xf32>, vector<1x1xf32>, vector<1x1xf32> -> vector<8x1xf32>
    %134 = arith.addf %132, %133 : vector<8x1xf32>
    %c0_50 = arith.constant 0 : index
    %c0_51 = arith.constant 0 : index
    %135 = vector.load %arg11[%c0_50, %c0_51] : memref<8x1xf32, #tpu.memory_space<vmem>>, vector<8x1xf32>
    tpu.vector_store %arg11[%c0_50, %c0_51], %134 {strides = array<i32>} : memref<8x1xf32, #tpu.memory_space<vmem>>, vector<8x1xf32>,
    %c3_i32_52 = arith.constant 3 : i32
    %136 = arith.cmpi eq, %arg0, %c3_i32_52 : i32
    %137 = arith.extui %136 : i1 to i32
    %c0_i32_53 = arith.constant 0 : i32
    %138 = arith.cmpi ne, %137, %c0_i32_53 : i32
    scf.if %138 {
      %c0_54 = arith.constant 0 : index
      %c0_55 = arith.constant 0 : index
      %139 = vector.load %arg10[%c0_54, %c0_55] : memref<8x32xf32, #tpu.memory_space<vmem>>, vector<8x32xf32>
      %c0_56 = arith.constant 0 : index
      %c0_57 = arith.constant 0 : index
      %140 = vector.load %arg11[%c0_56, %c0_57] : memref<8x1xf32, #tpu.memory_space<vmem>>, vector<8x1xf32>
      %cst_58 = arith.constant 1.000000e+00 : f32
      %141 = vector.broadcast %cst_58 : f32 to vector<8x1xf32>
      %142 = arith.maximumf %140, %141 : vector<8x1xf32>
      %143 = vector.broadcast %142 : vector<8x1xf32> to vector<8x32xf32>
      %144 = arith.divf %139, %143 : vector<8x32xf32>
      %c0_59 = arith.constant 0 : index
      %c0_60 = arith.constant 0 : index
      %145 = vector.load %arg7[%c0_59, %c0_60] : memref<32x2xf32, #tpu.memory_space<vmem>>, vector<32x2xf32>
      %cst_61 = arith.constant dense<0.000000e+00> : vector<8x2xf32>
      %146 = tpu.matmul %144, %145, %cst_61 {dimension_numbers = #tpu.dot_dimension_numbers<[1], [0], [0], [1], [0, 0, 1, 1], [], []>} : vector<8x32xf32>, vector<32x2xf32>, vector<8x2xf32> -> vector<8x2xf32>
      %c0_62 = arith.constant 0 : index
      %c0_63 = arith.constant 0 : index
      %147 = vector.load %arg8[%c0_62, %c0_63] : memref<1x2xf32, #tpu.memory_space<vmem>>, vector<1x2xf32>
      %148 = vector.broadcast %147 : vector<1x2xf32> to vector<8x2xf32>
      %149 = arith.addf %146, %148 : vector<8x2xf32>
      %cst_64 = arith.constant dense<0xFF800000> : vector<8xf32>
      %150 = vector.multi_reduction <maximumf>, %149, %cst_64 [1] : vector<8x2xf32> to vector<8xf32>
      %151 = vector.shape_cast %150 : vector<8xf32> to vector<8x1xf32>
      %152 = vector.broadcast %151 : vector<8x1xf32> to vector<8x2xf32>
      %153 = arith.subf %149, %152 : vector<8x2xf32>
      %154 = math.exp %153 : vector<8x2xf32>
      %cst_65 = arith.constant dense<0.000000e+00> : vector<8xf32>
      %155 = vector.multi_reduction <add>, %154, %cst_65 [1] : vector<8x2xf32> to vector<8xf32>
      %156 = vector.shape_cast %155 : vector<8xf32> to vector<8x1xf32>
      %157 = vector.broadcast %156 : vector<8x1xf32> to vector<8x2xf32>
      %158 = arith.divf %154, %157 : vector<8x2xf32>
      %c0_66 = arith.constant 0 : index
      %c0_67 = arith.constant 0 : index
      %159 = vector.load %arg9[%c0_66, %c0_67] : memref<8x2xf32, #tpu.memory_space<vmem>>, vector<8x2xf32>
      tpu.vector_store %arg9[%c0_66, %c0_67], %158 {strides = array<i32>} : memref<8x2xf32, #tpu.memory_space<vmem>>, vector<8x2xf32>,
    } else {
    }
    return
  }
  func.func @transform_0(%arg0: i32) -> (i32, i32) {
    %c0_i32 = arith.constant 0 : i32
    %c0_i32_0 = arith.constant 0 : i32
    return %arg0, %c0_i32 : i32, i32
  }
  func.func @transform_1(%arg0: i32) -> (i32, i32) {
    %c0_i32 = arith.constant 0 : i32
    %c0_i32_0 = arith.constant 0 : i32
    return %arg0, %c0_i32 : i32, i32
  }
  func.func @transform_2(%arg0: i32) -> (i32, i32) {
    %c0_i32 = arith.constant 0 : i32
    %c0_i32_0 = arith.constant 0 : i32
    %c0_i32_1 = arith.constant 0 : i32
    return %c0_i32, %c0_i32_0 : i32, i32
  }
  func.func @transform_3(%arg0: i32) -> (i32, i32) {
    %c0_i32 = arith.constant 0 : i32
    %c0_i32_0 = arith.constant 0 : i32
    %c0_i32_1 = arith.constant 0 : i32
    return %c0_i32, %c0_i32_0 : i32, i32
  }
  func.func @transform_4(%arg0: i32) -> (i32, i32) {
    %c0_i32 = arith.constant 0 : i32
    %c0_i32_0 = arith.constant 0 : i32
    %c0_i32_1 = arith.constant 0 : i32
    return %c0_i32, %c0_i32_0 : i32, i32
  }
  func.func @transform_5(%arg0: i32) -> (i32, i32) {
    %c0_i32 = arith.constant 0 : i32
    %c0_i32_0 = arith.constant 0 : i32
    %c0_i32_1 = arith.constant 0 : i32
    return %c0_i32, %c0_i32_0 : i32, i32
  }
  func.func @transform_6(%arg0: i32) -> (i32, i32) {
    %c0_i32 = arith.constant 0 : i32
    %c0_i32_0 = arith.constant 0 : i32
    %c0_i32_1 = arith.constant 0 : i32
    return %c0_i32, %c0_i32_0 : i32, i32
  }
  func.func @transform_7(%arg0: i32) -> (i32, i32) {
    %c0_i32 = arith.constant 0 : i32
    %c0_i32_0 = arith.constant 0 : i32
    %c0_i32_1 = arith.constant 0 : i32
    return %c0_i32, %c0_i32_0 : i32, i32
  }
  func.func @transform_8(%arg0: i32) -> (i32, i32) {
    %c0_i32 = arith.constant 0 : i32
    %c0_i32_0 = arith.constant 0 : i32
    %c0_i32_1 = arith.constant 0 : i32
    return %c0_i32, %c0_i32_0 : i32, i32
  }
}

</mosaic_0001>

<llo_original>
// kernel: tpu_custom_call.1
$region0: #{tpu_custom_call.1}
  #allocation0 [shape = 'u32[]', space=smem, size = 0x4, offset = 0x4, fixed_abs, tag = 'smem constant byte address 0x4 - core index']
  #allocation1 [shape = 'u32[144,128]{1,0:T(1,128)}', space=vmem, size = 0x12000, scoped, tag = 'internal scratch']
  #allocation2 [shape = 'f32[8,32]{1,0:T(8,128)}', space=vmem, size = 0x1000, scoped, tag = 'scratch operand']
  #allocation3 [shape = 'f32[8,1]{1,0:T(8,128)}', space=vmem, size = 0x1000, scoped, tag = 'scratch operand']
  %s0 = inlined_call_operand.vmem [shape: s32[64,1], index: 0, kind: input, shape index: {}]
  %s1 = inlined_call_operand.vmem [shape: bf16[64,32], index: 1, kind: input, shape index: {}]
  %s2 = inlined_call_operand.vmem [shape: bf16[32,64], index: 2, kind: input, shape index: {}]
  %s3 = inlined_call_operand.vmem [shape: f32[1,64], index: 3, kind: input, shape index: {}]
  %s4 = inlined_call_operand.vmem [shape: bf16[64,32], index: 4, kind: input, shape index: {}]
  %s5 = inlined_call_operand.vmem [shape: f32[1,32], index: 5, kind: input, shape index: {}]
  %s6 = inlined_call_operand.vmem [shape: f32[32,2], index: 6, kind: input, shape index: {}]
  %s7 = inlined_call_operand.vmem [shape: f32[1,2], index: 7, kind: input, shape index: {}]
  %s8 = inlined_call_operand.vmem [shape: f32[8,2], index: 8, kind: output, shape index: {}]
  %s9 = sld [smem:[#allocation0]]
  $region73: #{tpu_custom_call.1} parent=0
    _
  %s11 = ssub.s32 1, %s9
  %s12 = scalar_select 0, %s11, %s9
  loop: start=0, step=1, limit=6
  $region2: #{tpu_custom_call.1} parent=0 // loop_pre_header
    _
  $region3: #{tpu_custom_call.1} parent=0 // loop_header
    %s14 = sphi 0, %s18
    %p15 = scmp.ge.s32.totalorder %s14, 6
    %s24 = sphi 0, %s26
    %s27 = sphi 0, %s24
    %s28 = sphi 0, %s27
    %s44 = sphi 0, %s28
    %s50 = sphi 0, %s52
    %s53 = sphi 0, %s50
    %s54 = sphi 0, %s53
    %s70 = sphi 0, %s54
    %s74 = sphi 0, %s74
    %s76 = sphi 0, %s74
    %s77 = sphi 0, %s76
    %s91 = sphi 0, %s77
    %s95 = sphi 0, %s95
    %s97 = sphi 0, %s95
    %s98 = sphi 0, %s97
    %s112 = sphi 0, %s98
    %s116 = sphi 0, %s116
    %s118 = sphi 0, %s116
    %s119 = sphi 0, %s118
    %s133 = sphi 0, %s119
    %s137 = sphi 0, %s137
    %s139 = sphi 0, %s137
    %s140 = sphi 0, %s139
    %s154 = sphi 0, %s140
    %s158 = sphi 0, %s158
    %s160 = sphi 0, %s158
    %s161 = sphi 0, %s160
    %s175 = sphi 0, %s161
    %s179 = sphi 0, %s179
    %s181 = sphi 0, %s179
    %s182 = sphi 0, %s181
    %s196 = sphi 0, %s182
    %s200 = sphi 0, %s200
    %s202 = sphi 0, %s200
    %s203 = sphi 0, %s202
    %s217 = sphi 0, %s203
  $region4: #{tpu_custom_call.1} parent=0 // loop_header_branch
    %17 = sbr.rel (%p15) target = $region8
  $region5: #{tpu_custom_call.1} parent=0 // loop_body
    %s19 = ssub.s32 %s14, 1
    %s20 = ssub.s32 %s14, 2
    %s21 = sadd.s32 %s14, 1
    %s22 = ssub.s32 %s14, %s21
    %p23 = scmp.eq.s32.totalorder %s22, 0
    %s25 = sadd.s32 %s24, 1
    %s26 = scalar_select %p23, %s24, %s25
    %p29 = pneg %p23
    %p30 = scmp.eq.s32.totalorder %s14, 3
    %p31 = por %p29, %p30
    %p32 = scmp.ne.s32.totalorder %s24, %s27
    %p33 = scmp.eq.s32.totalorder %s14, 0
    %p34 = por %p32, %p33
    %p35 = scmp.ne.s32.totalorder %s24, %s27
    %p36 = scmp.eq.s32.totalorder %s19, 3
    %p37 = por %p35, %p36
    %p38 = scmp.ne.s32.totalorder %s27, %s28
    %p39 = scmp.eq.s32.totalorder %s19, 0
    %p40 = por %p38, %p39
    %p41 = scmp.ne.s32.totalorder %s27, %s28
    %p42 = scmp.eq.s32.totalorder %s20, 3
    %p43 = por %p41, %p42
    %p45 = scmp.ne.s32.totalorder %s28, %s44
    %p46 = scmp.eq.s32.totalorder %s20, 0
    %p47 = por %p45, %p46
    %s48 = ssub.s32 %s14, %s21
    %p49 = scmp.eq.s32.totalorder %s48, 0
    %s51 = sadd.s32 %s50, 1
    %s52 = scalar_select %p49, %s50, %s51
    %p55 = pneg %p49
    %p56 = scmp.eq.s32.totalorder %s14, 3
    %p57 = por %p55, %p56
    %p58 = scmp.ne.s32.totalorder %s50, %s53
    %p59 = scmp.eq.s32.totalorder %s14, 0
    %p60 = por %p58, %p59
    %p61 = scmp.ne.s32.totalorder %s50, %s53
    %p62 = scmp.eq.s32.totalorder %s19, 3
    %p63 = por %p61, %p62
    %p64 = scmp.ne.s32.totalorder %s53, %s54
    %p65 = scmp.eq.s32.totalorder %s19, 0
    %p66 = por %p64, %p65
    %p67 = scmp.ne.s32.totalorder %s53, %s54
    %p68 = scmp.eq.s32.totalorder %s20, 3
    %p69 = por %p67, %p68
    %p71 = scmp.ne.s32.totalorder %s54, %s70
    %p72 = scmp.eq.s32.totalorder %s20, 0
    %p73 = por %p71, %p72
    %s75 = sadd.s32 %s74, 1
    %p78 = scmp.eq.s32.totalorder %s14, 3
    %p79 = scmp.ne.s32.totalorder %s74, %s76
    %p80 = scmp.eq.s32.totalorder %s14, 0
    %p81 = por %p79, %p80
    %p82 = scmp.ne.s32.totalorder %s74, %s76
    %p83 = scmp.eq.s32.totalorder %s19, 3
    %p84 = por %p82, %p83
    %p85 = scmp.ne.s32.totalorder %s76, %s77
    %p86 = scmp.eq.s32.totalorder %s19, 0
    %p87 = por %p85, %p86
    %p88 = scmp.ne.s32.totalorder %s76, %s77
    %p89 = scmp.eq.s32.totalorder %s20, 3
    %p90 = por %p88, %p89
    %p92 = scmp.ne.s32.totalorder %s77, %s91
    %p93 = scmp.eq.s32.totalorder %s20, 0
    %p94 = por %p92, %p93
    %s96 = sadd.s32 %s95, 1
    %p99 = scmp.eq.s32.totalorder %s14, 3
    %p100 = scmp.ne.s32.totalorder %s95, %s97
    %p101 = scmp.eq.s32.totalorder %s14, 0
    %p102 = por %p100, %p101
    %p103 = scmp.ne.s32.totalorder %s95, %s97
    %p104 = scmp.eq.s32.totalorder %s19, 3
    %p105 = por %p103, %p104
    %p106 = scmp.ne.s32.totalorder %s97, %s98
    %p107 = scmp.eq.s32.totalorder %s19, 0
    %p108 = por %p106, %p107
    %p109 = scmp.ne.s32.totalorder %s97, %s98
    %p110 = scmp.eq.s32.totalorder %s20, 3
    %p111 = por %p109, %p110
    %p113 = scmp.ne.s32.totalorder %s98, %s112
    %p114 = scmp.eq.s32.totalorder %s20, 0
    %p115 = por %p113, %p114
    %s117 = sadd.s32 %s116, 1
    %p120 = scmp.eq.s32.totalorder %s14, 3
    %p121 = scmp.ne.s32.totalorder %s116, %s118
    %p122 = scmp.eq.s32.totalorder %s14, 0
    %p123 = por %p121, %p122
    %p124 = scmp.ne.s32.totalorder %s116, %s118
    %p125 = scmp.eq.s32.totalorder %s19, 3
    %p126 = por %p124, %p125
    %p127 = scmp.ne.s32.totalorder %s118, %s119
    %p128 = scmp.eq.s32.totalorder %s19, 0
    %p129 = por %p127, %p128
    %p130 = scmp.ne.s32.totalorder %s118, %s119
    %p131 = scmp.eq.s32.totalorder %s20, 3
    %p132 = por %p130, %p131
    %p134 = scmp.ne.s32.totalorder %s119, %s133
    %p135 = scmp.eq.s32.totalorder %s20, 0
    %p136 = por %p134, %p135
    %s138 = sadd.s32 %s137, 1
    %p141 = scmp.eq.s32.totalorder %s14, 3
    %p142 = scmp.ne.s32.totalorder %s137, %s139
    %p143 = scmp.eq.s32.totalorder %s14, 0
    %p144 = por %p142, %p143
    %p145 = scmp.ne.s32.totalorder %s137, %s139
    %p146 = scmp.eq.s32.totalorder %s19, 3
    %p147 = por %p145, %p146
    %p148 = scmp.ne.s32.totalorder %s139, %s140
    %p149 = scmp.eq.s32.totalorder %s19, 0
    %p150 = por %p148, %p149
    %p151 = scmp.ne.s32.totalorder %s139, %s140
    %p152 = scmp.eq.s32.totalorder %s20, 3
    %p153 = por %p151, %p152
    %p155 = scmp.ne.s32.totalorder %s140, %s154
    %p156 = scmp.eq.s32.totalorder %s20, 0
    %p157 = por %p155, %p156
    %s159 = sadd.s32 %s158, 1
    %p162 = scmp.eq.s32.totalorder %s14, 3
    %p163 = scmp.ne.s32.totalorder %s158, %s160
    %p164 = scmp.eq.s32.totalorder %s14, 0
    %p165 = por %p163, %p164
    %p166 = scmp.ne.s32.totalorder %s158, %s160
    %p167 = scmp.eq.s32.totalorder %s19, 3
    %p168 = por %p166, %p167
    %p169 = scmp.ne.s32.totalorder %s160, %s161
    %p170 = scmp.eq.s32.totalorder %s19, 0
    %p171 = por %p169, %p170
    %p172 = scmp.ne.s32.totalorder %s160, %s161
    %p173 = scmp.eq.s32.totalorder %s20, 3
    %p174 = por %p172, %p173
    %p176 = scmp.ne.s32.totalorder %s161, %s175
    %p177 = scmp.eq.s32.totalorder %s20, 0
    %p178 = por %p176, %p177
    %s180 = sadd.s32 %s179, 1
    %p183 = scmp.eq.s32.totalorder %s14, 3
    %p184 = scmp.ne.s32.totalorder %s179, %s181
    %p185 = scmp.eq.s32.totalorder %s14, 0
    %p186 = por %p184, %p185
    %p187 = scmp.ne.s32.totalorder %s179, %s181
    %p188 = scmp.eq.s32.totalorder %s19, 3
    %p189 = por %p187, %p188
    %p190 = scmp.ne.s32.totalorder %s181, %s182
    %p191 = scmp.eq.s32.totalorder %s19, 0
    %p192 = por %p190, %p191
    %p193 = scmp.ne.s32.totalorder %s181, %s182
    %p194 = scmp.eq.s32.totalorder %s20, 3
    %p195 = por %p193, %p194
    %p197 = scmp.ne.s32.totalorder %s182, %s196
    %p198 = scmp.eq.s32.totalorder %s20, 0
    %p199 = por %p197, %p198
    %s201 = sadd.s32 %s200, 1
    %p204 = scmp.eq.s32.totalorder %s14, 3
    %p205 = scmp.ne.s32.totalorder %s200, %s202
    %p206 = scmp.eq.s32.totalorder %s14, 0
    %p207 = por %p205, %p206
    %p208 = scmp.ne.s32.totalorder %s200, %s202
    %p209 = scmp.eq.s32.totalorder %s19, 3
    %p210 = por %p208, %p209
    %p211 = scmp.ne.s32.totalorder %s202, %s203
    %p212 = scmp.eq.s32.totalorder %s19, 0
    %p213 = por %p211, %p212
    %p214 = scmp.ne.s32.totalorder %s202, %s203
    %p215 = scmp.eq.s32.totalorder %s20, 3
    %p216 = por %p214, %p215
    %p218 = scmp.ne.s32.totalorder %s203, %s217
    %p219 = scmp.eq.s32.totalorder %s20, 0
    %p220 = por %p218, %p219
    %p221 = scmp.le.s32.totalorder 1, %s14
    %p222 = scmp.lt.s32.totalorder %s14, 5
    %p223 = pnand %p221, %p222
    %p224 = pneg %p223
    // Predicated region
    $region9: #{tpu_custom_call.1} parent=5 // pred_check
      _
    $region10: #{tpu_custom_call.1} parent=5 // pred_check_branch
      %226 = sbr.rel (%p223) target = $region12
    $region11: #{tpu_custom_call.1} parent=5 // pred_region
      %s227 = ssub.s32 %s14, 1
      // Predicated region
      $region13: #{tpu_custom_call.1} parent=11 // pred_check
        %p228 = pneg %p87
      $region14: #{tpu_custom_call.1} parent=11 // pred_check_branch
        %230 = sbr.rel (%p228) target = $region16
      $region15: #{tpu_custom_call.1} parent=11 // pred_region
        _
      $region16: #{tpu_custom_call.1} parent=11 // pred_fallthru
        _
      // Predicated region
      $region17: #{tpu_custom_call.1} parent=11 // pred_check
        %p231 = pneg %p108
      $region18: #{tpu_custom_call.1} parent=11 // pred_check_branch
        %233 = sbr.rel (%p231) target = $region20
      $region19: #{tpu_custom_call.1} parent=11 // pred_region
        _
      $region20: #{tpu_custom_call.1} parent=11 // pred_fallthru
        _
      // Predicated region
      $region21: #{tpu_custom_call.1} parent=11 // pred_check
        %p234 = pneg %p129
      $region22: #{tpu_custom_call.1} parent=11 // pred_check_branch
        %236 = sbr.rel (%p234) target = $region24
      $region23: #{tpu_custom_call.1} parent=11 // pred_region
        _
      $region24: #{tpu_custom_call.1} parent=11 // pred_fallthru
        _
      // Predicated region
      $region25: #{tpu_custom_call.1} parent=11 // pred_check
        %p237 = pneg %p150
      $region26: #{tpu_custom_call.1} parent=11 // pred_check_branch
        %239 = sbr.rel (%p237) target = $region28
      $region27: #{tpu_custom_call.1} parent=11 // pred_region
        _
      $region28: #{tpu_custom_call.1} parent=11 // pred_fallthru
        _
      // Predicated region
      $region29: #{tpu_custom_call.1} parent=11 // pred_check
        %p240 = pneg %p171
      $region30: #{tpu_custom_call.1} parent=11 // pred_check_branch
        %242 = sbr.rel (%p240) target = $region32
      $region31: #{tpu_custom_call.1} parent=11 // pred_region
        _
      $region32: #{tpu_custom_call.1} parent=11 // pred_fallthru
        _
      // Predicated region
      $region33: #{tpu_custom_call.1} parent=11 // pred_check
        %p243 = pneg %p192
      $region34: #{tpu_custom_call.1} parent=11 // pred_check_branch
        %245 = sbr.rel (%p243) target = $region36
      $region35: #{tpu_custom_call.1} parent=11 // pred_region
        _
      $region36: #{tpu_custom_call.1} parent=11 // pred_fallthru
        _
    $region12: #{tpu_custom_call.1} parent=5 // pred_fallthru
      _
    %p246 = scmp.lt.s32.totalorder %s14, 4
    // Predicated region
    $region37: #{tpu_custom_call.1} parent=5 // pred_check
      %p247 = pneg %p246
    $region38: #{tpu_custom_call.1} parent=5 // pred_check_branch
      %249 = sbr.rel (%p247) target = $region40
    $region39: #{tpu_custom_call.1} parent=5 // pred_region
      // Predicated region
      $region41: #{tpu_custom_call.1} parent=39 // pred_check
        %p250 = pneg %p34
      $region42: #{tpu_custom_call.1} parent=39 // pred_check_branch
        %252 = sbr.rel (%p250) target = $region44
      $region43: #{tpu_custom_call.1} parent=39 // pred_region
        %s253 = smul.u32 2, %s14
        %p254 = scmp.lt.s32.totalorder %s253, 7
        %s255 = scalar_select %p254, %s253, 7
        %s256 = smul.addr %s255, 8
        %s257 = scalar_lea.vmem %s0, %s256
        %s258 = smul.u32 2, %s14
      $region44: #{tpu_custom_call.1} parent=39 // pred_fallthru
        _
      // Predicated region
      $region45: #{tpu_custom_call.1} parent=39 // pred_check
        %p259 = pneg %p60
      $region46: #{tpu_custom_call.1} parent=39 // pred_check_branch
        %261 = sbr.rel (%p259) target = $region48
      $region47: #{tpu_custom_call.1} parent=39 // pred_region
        %s262 = smul.u32 2, %s14
        %p263 = scmp.lt.s32.totalorder %s262, 7
        %s264 = scalar_select %p263, %s262, 7
        %s265 = smul.addr %s264, 4
        %s266 = scalar_lea.vmem %s1, %s265
        %s267 = smul.u32 2, %s14
      $region48: #{tpu_custom_call.1} parent=39 // pred_fallthru
        _
    $region40: #{tpu_custom_call.1} parent=5 // pred_fallthru
      _
    %p268 = scmp.le.s32.totalorder 1, %s14
    %p269 = scmp.lt.s32.totalorder %s14, 5
    %p270 = pnand %p268, %p269
    %p271 = pneg %p270
    // Predicated region
    $region49: #{tpu_custom_call.1} parent=5 // pred_check
      _
    $region50: #{tpu_custom_call.1} parent=5 // pred_check_branch
      %273 = sbr.rel (%p270) target = $region52
    $region51: #{tpu_custom_call.1} parent=5 // pred_region
      %s274 = ssub.s32 %s14, 1
      %s275 = smul.u32 2, %s19
      %p276 = scmp.lt.s32.totalorder %s275, 7
      %s277 = scalar_select %p276, %s275, 7
      %s278 = smul.addr %s277, 8
      %s279 = scalar_lea.vmem %s0, %s278
      %p280 = pneg %p40
      %p281 = pneg %p37
      %s282 = smul.u32 2, %s19
      %p283 = scmp.lt.s32.totalorder %s282, 7
      %s284 = scalar_select %p283, %s282, 7
      %s285 = smul.addr %s284, 4
      %s286 = scalar_lea.vmem %s1, %s285
      %p287 = pneg %p66
      %p288 = pneg %p63
      %p289 = pneg %p87
      %p290 = pneg %p84
      %p291 = pneg %p108
      %p292 = pneg %p105
      %p293 = pneg %p129
      %p294 = pneg %p126
      %p295 = pneg %p150
      %p296 = pneg %p147
      %p297 = pneg %p171
      %p298 = pneg %p168
      %p299 = pneg %p192
      %p300 = pneg %p189
      %p301 = pneg %p213
      %p302 = pneg %p210
      %s303 = smul.u32 2, %s19
      %p304 = scmp.lt.s32.totalorder %s303, 7
      %s305 = scalar_select %p304, %s303, 7
      %s306 = smul.addr %s305, 8
      %s307 = scalar_lea.vmem %s0, %s306
      %s308 = smul.u32 2, %s19
      %s309 = smul.u32 2, %s19
      %p310 = scmp.lt.s32.totalorder %s309, 7
      %s311 = scalar_select %p310, %s309, 7
      %s312 = smul.addr %s311, 4
      %s313 = scalar_lea.vmem %s1, %s312
      %s314 = smul.u32 2, %s19
      %p316 = scmp.eq.s32.totalorder %s19, 0
      // Predicated region
      $region53: #{tpu_custom_call.1} parent=51 // pred_check
        %p317 = pneg %p316
      $region54: #{tpu_custom_call.1} parent=51 // pred_check_branch
        %319 = sbr.rel (%p317) target = $region56
      $region55: #{tpu_custom_call.1} parent=51 // pred_region
        %vm320 = vcmask 261120
        %321 = vst.msk [vmem:[#allocation2] sm:$0xff] %vm320, 0.0
        %vm322 = vcmask 7168
        %323 = vst.msk [vmem:[#allocation3] sm:$0xff] %vm322, 0.0
      $region56: #{tpu_custom_call.1} parent=51 // pred_fallthru
        _
      %v324 = vld [vmem:[%s313] sm:$0xf]
      %v325 = vld [vmem:[%s313 + $0x4] sm:$0xf]
      %v326 = vld [vmem:[%s2] sm:$0xf]
      %v327 = vld [vmem:[%s2 + $0x4] sm:$0xf]
      %v328 = vld [vmem:[%s2 + $0x8] sm:$0xf]
      %v329 = vld [vmem:[%s2 + $0xc] sm:$0xf]
      %v330 = vld [vmem:[%s3] sm:$0x1]
      %v332 = vlaneseq
      %v333 = vshrl.u32 %v332, 7
      %v334 = vsub.s32 0, %v333
      %v335 = vrot.slane %v330, %v334
      %v339 = vunpack.c.l.b16 %v324
      %v340 = vunpack.c.l.b16 %v325
      %v341 = vpack.c.b16 %v340, %v339
      %v346 = vunpack.c.l.b16 %v326
      %v347 = vunpack.c.l.b16 %v327
      %v348 = vunpack.c.l.b16 %v328
      %v349 = vunpack.c.l.b16 %v329
      %v350 = vpack.c.b16 %v347, %v346
      %v351 = vpack.c.b16 %v349, %v348
      %vm354 = vcmask 261120
      %v356 = vsel %vm354, %v341, 0
      %358 = vmatprep.subr.bf16.mxu0 0
      %359 = vmatpush1.bf16.msra.mxu0 0
      %360 = vmatprep.subr.bf16.mxu0 0
      %361 = vmatpush1.bf16.msra.mxu0 0
      %362 = vmatprep.subr.bf16.mxu0 0
      %363 = vmatpush1.bf16.msra.mxu0 0
      %364 = vmatprep.subr.bf16.mxu0 0
      %365 = vmatpush1.bf16.msra.mxu0 0
      %366 = vmatprep.subr.bf16.mxu0 0
      %367 = vmatpush1.bf16.msra.mxu0 0
      %368 = vmatprep.subr.bf16.mxu0 0
      %369 = vmatpush1.bf16.msra.mxu0 0
      %370 = vmatprep.subr.bf16.mxu0 0
      %371 = vmatpush1.bf16.msra.mxu0 %v351
      %372 = vmatprep.subr.bf16.mxu0 0
      %373 = vmatpush1.bf16.msra.mxu0 %v350
      %374 = vmatprep.subr.bf16.mxu0 0
      %375 = vmatpush2.bf16.msra.mxu0 0
      %376 = vmatprep.subr.bf16.mxu0 0
      %377 = vmatpush2.bf16.msra.mxu0 0
      %378 = vmatprep.subr.bf16.mxu0 0
      %379 = vmatpush2.bf16.msra.mxu0 0
      %380 = vmatprep.subr.bf16.mxu0 0
      %381 = vmatpush2.bf16.msra.mxu0 0
      %382 = vmatprep.subr.bf16.mxu0 0
      %383 = vmatpush2.bf16.msra.mxu0 0
      %384 = vmatprep.subr.bf16.mxu0 0
      %385 = vmatpush2.bf16.msra.mxu0 0
      %386 = vmatprep.subr.bf16.mxu0 0
      %387 = vmatpush2.bf16.msra.mxu0 0
      %388 = vmatprep.subr.bf16.mxu0 0
      %389 = vmatpush2.bf16.msra.mxu0 0
      %390 = vmatprep.mubr.bf16.mxu0 0
      %391 = vmatmul.mubr.bf16.gmra.mxu0 %v356
      %v392 = vpop.f32.mrf.mxu0
      %v393 = vadd.f32 %v335, %v392
      %v394 = vpop.f32.mrf.mxu0
      %v395 = vpop.f32.mrf.mxu0
      %v396 = vadd.f32 %v335, %v395
      %v397 = vpop.f32.mrf.mxu0
      %398 = vdwg.mxu0
      %vm399 = vcmp.gt.f32.partialorder %v393, 0.0
      %vm400 = vcmp.gt.f32.partialorder %v396, 0.0
      %v401 = vmin.f32 %v393, 0.0
      %v402 = vmin.f32 %v396, 0.0
      %v403 = vmul.f32 %v401, 1.442695
      %v404 = vpow.pop %v403
      %v405 = vmul.f32 %v402, 1.442695
      %v406 = vpow.pop %v405
      %v407 = vsub.f32 %v404, 1.0
      %v408 = vsub.f32 %v406, 1.0
      %v409 = vsel %vm399, %v393, %v407
      %v410 = vsel %vm400, %v396, %v408
      %v411 = vpack.c.bf16 %v410, %v409
      %v412 = vld [vmem:[%s4] sm:$0xf]
      %v413 = vld [vmem:[%s4 + $0x4] sm:$0xf]
      %v414 = vld [vmem:[%s4 + $0x8] sm:$0xf]
      %v415 = vld [vmem:[%s4 + $0xc] sm:$0xf]
      %v416 = vld [vmem:[%s4 + $0x10] sm:$0xf]
      %v417 = vld [vmem:[%s4 + $0x14] sm:$0xf]
      %v418 = vld [vmem:[%s4 + $0x18] sm:$0xf]
      %v419 = vld [vmem:[%s4 + $0x1c] sm:$0xf]
      %v420 = vld [vmem:[%s5] sm:$0x1]
      %v422 = vlaneseq
      %v423 = vshrl.u32 %v422, 7
      %v424 = vsub.s32 0, %v423
      %v425 = vrot.slane %v420, %v424
      %v435 = vunpack.c.l.b16 %v412
      %v436 = vunpack.c.l.b16 %v413
      %v437 = vunpack.c.l.b16 %v414
      %v438 = vunpack.c.l.b16 %v415
      %v439 = vunpack.c.l.b16 %v416
      %v440 = vunpack.c.l.b16 %v417
      %v441 = vunpack.c.l.b16 %v418
      %v442 = vunpack.c.l.b16 %v419
      %v443 = vpack.c.b16 %v436, %v435
      %v444 = vpack.c.b16 %v438, %v437
      %v445 = vpack.c.b16 %v440, %v439
      %v446 = vpack.c.b16 %v442, %v441
      %vm451 = vcmask 523264
      %v453 = vsel %vm451, %v411, 0
      %455 = vmatprep.subr.bf16.mxu0 0
      %456 = vmatpush1.bf16.msra.mxu0 0
      %457 = vmatprep.subr.bf16.mxu0 0
      %458 = vmatpush1.bf16.msra.mxu0 0
      %459 = vmatprep.subr.bf16.mxu0 0
      %460 = vmatpush1.bf16.msra.mxu0 0
      %461 = vmatprep.subr.bf16.mxu0 0
      %462 = vmatpush1.bf16.msra.mxu0 0
      %463 = vmatprep.subr.bf16.mxu0 0
      %464 = vmatpush1.bf16.msra.mxu0 %v446
      %465 = vmatprep.subr.bf16.mxu0 0
      %466 = vmatpush1.bf16.msra.mxu0 %v445
      %467 = vmatprep.subr.bf16.mxu0 0
      %468 = vmatpush1.bf16.msra.mxu0 %v444
      %469 = vmatprep.subr.bf16.mxu0 0
      %470 = vmatpush1.bf16.msra.mxu0 %v443
      %471 = vmatprep.subr.bf16.mxu0 0
      %472 = vmatpush2.bf16.msra.mxu0 0
      %473 = vmatprep.subr.bf16.mxu0 0
      %474 = vmatpush2.bf16.msra.mxu0 0
      %475 = vmatprep.subr.bf16.mxu0 0
      %476 = vmatpush2.bf16.msra.mxu0 0
      %477 = vmatprep.subr.bf16.mxu0 0
      %478 = vmatpush2.bf16.msra.mxu0 0
      %479 = vmatprep.subr.bf16.mxu0 0
      %480 = vmatpush2.bf16.msra.mxu0 0
      %481 = vmatprep.subr.bf16.mxu0 0
      %482 = vmatpush2.bf16.msra.mxu0 0
      %483 = vmatprep.subr.bf16.mxu0 0
      %484 = vmatpush2.bf16.msra.mxu0 0
      %485 = vmatprep.subr.bf16.mxu0 0
      %486 = vmatpush2.bf16.msra.mxu0 0
      %487 = vmatprep.mubr.bf16.mxu0 0
      %488 = vmatmul.mubr.bf16.gmra.mxu0 %v453
      %v489 = vpop.f32.mrf.mxu0
      %v490 = vadd.f32 %v425, %v489
      %v491 = vpop.f32.mrf.mxu0
      %v492 = vpop.f32.mrf.mxu0
      %v493 = vadd.f32 %v425, %v492
      %v494 = vpop.f32.mrf.mxu0
      %495 = vdwg.mxu0
      %vm496 = vcmp.gt.f32.partialorder %v490, 0.0
      %vm497 = vcmp.gt.f32.partialorder %v493, 0.0
      %v498 = vmin.f32 %v490, 0.0
      %v499 = vmin.f32 %v493, 0.0
      %v500 = vmul.f32 %v498, 1.442695
      %v501 = vpow.pop %v500
      %v502 = vmul.f32 %v499, 1.442695
      %v503 = vpow.pop %v502
      %v504 = vsub.f32 %v501, 1.0
      %v505 = vsub.f32 %v503, 1.0
      %v506 = vsel %vm496, %v490, %v504
      %v507 = vsel %vm497, %v493, %v505
      %v508 = vld [vmem:[%s307] sm:$0xff]
      %v509 = vld [vmem:[%s307 + $0x8] sm:$0xff]
      %vm510 = vcmp.eq.s32.totalorder %v508, 0
      %vm511 = vcmp.eq.s32.totalorder %v509, 0
      %v512 = vsel %vm510, 1, 0
      %v513 = vsel %vm511, 1, 0
      %514 = vset.pattern.permute.xlu0 0
      %515 = vperm.xlu0 %514, %v512
      %v516 = vpop.permute.xlu0 %515
      %517 = vset.pattern.permute.xlu0 0
      %518 = vperm.xlu0 %517, %v513
      %v519 = vpop.permute.xlu0 %518
      %vm520 = vcmp.eq.s32.totalorder %v516, 1
      %vm521 = vcmp.eq.s32.totalorder %v519, 1
      %v522 = vsel %vm520, %v506, 0.0
      %v523 = vsel %vm521, %v507, 0.0
      %v524 = vsel %vm354, %v522, 0.0
      %v525 = vsel %vm354, %v523, 0.0
      %v526 = vadd.f32 %v524, %v525
      %v527 = vrot.slane %v526, 4
      %v528 = vadd.f32 %v526, %v527
      %v529 = vrot.slane %v528, 2
      %v530 = vadd.f32 %v528, %v529
      %v531 = vrot.slane %v530, 1
      %v532 = vadd.f32 %v530, %v531
      %v533 = vcvt.s32.f32 %v512
      %v534 = vcvt.s32.f32 %v513
      %vm535 = vcmask 7168
      %v536 = vsel %vm535, %v533, 0.0
      %v537 = vsel %vm535, %v534, 0.0
      %v538 = vadd.f32 %v536, %v537
      %v539 = vrot.slane %v538, 4
      %v540 = vadd.f32 %v538, %v539
      %v541 = vrot.slane %v540, 2
      %v542 = vadd.f32 %v540, %v541
      %v543 = vrot.slane %v542, 1
      %v544 = vadd.f32 %v542, %v543
      %vm545 = vcmp.eq.s32.totalorder %v508, 1
      %vm546 = vcmp.eq.s32.totalorder %v509, 1
      %v547 = vsel %vm545, 1, 0
      %v548 = vsel %vm546, 1, 0
      %549 = vset.pattern.permute.xlu0 0
      %550 = vperm.xlu0 %549, %v547
      %v551 = vpop.permute.xlu0 %550
      %552 = vset.pattern.permute.xlu0 0
      %553 = vperm.xlu0 %552, %v548
      %v554 = vpop.permute.xlu0 %553
      %vm555 = vcmp.eq.s32.totalorder %v551, 1
      %vm556 = vcmp.eq.s32.totalorder %v554, 1
      %v557 = vsel %vm555, %v506, 0.0
      %v558 = vsel %vm556, %v507, 0.0
      %v559 = vsel %vm354, %v557, 0.0
      %v560 = vsel %vm354, %v558, 0.0
      %v561 = vadd.f32 %v559, %v560
      %v562 = vrot.slane %v561, 4
      %v563 = vadd.f32 %v561, %v562
      %v564 = vrot.slane %v563, 2
      %v565 = vadd.f32 %v563, %v564
      %v566 = vrot.slane %v565, 1
      %v567 = vadd.f32 %v565, %v566
      %v568 = vcvt.s32.f32 %v547
      %v569 = vcvt.s32.f32 %v548
      %v570 = vsel %vm535, %v568, 0.0
      %v571 = vsel %vm535, %v569, 0.0
      %v572 = vadd.f32 %v570, %v571
      %v573 = vrot.slane %v572, 4
      %v574 = vadd.f32 %v572, %v573
      %v575 = vrot.slane %v574, 2
      %v576 = vadd.f32 %v574, %v575
      %v577 = vrot.slane %v576, 1
      %v578 = vadd.f32 %v576, %v577
      %vm579 = vcmp.eq.s32.totalorder %v508, 2
      %vm580 = vcmp.eq.s32.totalorder %v509, 2
      %v581 = vsel %vm579, 1, 0
      %v582 = vsel %vm580, 1, 0
      %583 = vset.pattern.permute.xlu0 0
      %584 = vperm.xlu0 %583, %v581
      %v585 = vpop.permute.xlu0 %584
      %586 = vset.pattern.permute.xlu0 0
      %587 = vperm.xlu0 %586, %v582
      %v588 = vpop.permute.xlu0 %587
      %vm589 = vcmp.eq.s32.totalorder %v585, 1
      %vm590 = vcmp.eq.s32.totalorder %v588, 1
      %v591 = vsel %vm589, %v506, 0.0
      %v592 = vsel %vm590, %v507, 0.0
      %v593 = vsel %vm354, %v591, 0.0
      %v594 = vsel %vm354, %v592, 0.0
      %v595 = vadd.f32 %v593, %v594
      %v596 = vrot.slane %v595, 4
      %v597 = vadd.f32 %v595, %v596
      %v598 = vrot.slane %v597, 2
      %v599 = vadd.f32 %v597, %v598
      %v600 = vrot.slane %v599, 1
      %v601 = vadd.f32 %v599, %v600
      %v602 = vcvt.s32.f32 %v581
      %v603 = vcvt.s32.f32 %v582
      %v604 = vsel %vm535, %v602, 0.0
      %v605 = vsel %vm535, %v603, 0.0
      %v606 = vadd.f32 %v604, %v605
      %v607 = vrot.slane %v606, 4
      %v608 = vadd.f32 %v606, %v607
      %v609 = vrot.slane %v608, 2
      %v610 = vadd.f32 %v608, %v609
      %v611 = vrot.slane %v610, 1
      %v612 = vadd.f32 %v610, %v611
      %vm613 = vcmp.eq.s32.totalorder %v508, 3
      %vm614 = vcmp.eq.s32.totalorder %v509, 3
      %v615 = vsel %vm613, 1, 0
      %v616 = vsel %vm614, 1, 0
      %617 = vset.pattern.permute.xlu0 0
      %618 = vperm.xlu0 %617, %v615
      %v619 = vpop.permute.xlu0 %618
      %620 = vset.pattern.permute.xlu0 0
      %621 = vperm.xlu0 %620, %v616
      %v622 = vpop.permute.xlu0 %621
      %vm623 = vcmp.eq.s32.totalorder %v619, 1
      %vm624 = vcmp.eq.s32.totalorder %v622, 1
      %v625 = vsel %vm623, %v506, 0.0
      %v626 = vsel %vm624, %v507, 0.0
      %v627 = vsel %vm354, %v625, 0.0
      %v628 = vsel %vm354, %v626, 0.0
      %v629 = vadd.f32 %v627, %v628
      %v630 = vrot.slane %v629, 4
      %v631 = vadd.f32 %v629, %v630
      %v632 = vrot.slane %v631, 2
      %v633 = vadd.f32 %v631, %v632
      %v634 = vrot.slane %v633, 1
      %v635 = vadd.f32 %v633, %v634
      %v636 = vcvt.s32.f32 %v615
      %v637 = vcvt.s32.f32 %v616
      %v638 = vsel %vm535, %v636, 0.0
      %v639 = vsel %vm535, %v637, 0.0
      %v640 = vadd.f32 %v638, %v639
      %v641 = vrot.slane %v640, 4
      %v642 = vadd.f32 %v640, %v641
      %v643 = vrot.slane %v642, 2
      %v644 = vadd.f32 %v642, %v643
      %v645 = vrot.slane %v644, 1
      %v646 = vadd.f32 %v644, %v645
      %vm647 = vcmp.eq.s32.totalorder %v508, 4
      %vm648 = vcmp.eq.s32.totalorder %v509, 4
      %v649 = vsel %vm647, 1, 0
      %v650 = vsel %vm648, 1, 0
      %651 = vset.pattern.permute.xlu0 0
      %652 = vperm.xlu0 %651, %v649
      %v653 = vpop.permute.xlu0 %652
      %654 = vset.pattern.permute.xlu0 0
      %655 = vperm.xlu0 %654, %v650
      %v656 = vpop.permute.xlu0 %655
      %vm657 = vcmp.eq.s32.totalorder %v653, 1
      %vm658 = vcmp.eq.s32.totalorder %v656, 1
      %v659 = vsel %vm657, %v506, 0.0
      %v660 = vsel %vm658, %v507, 0.0
      %v661 = vsel %vm354, %v659, 0.0
      %v662 = vsel %vm354, %v660, 0.0
      %v663 = vadd.f32 %v661, %v662
      %v664 = vrot.slane %v663, 4
      %v665 = vadd.f32 %v663, %v664
      %v666 = vrot.slane %v665, 2
      %v667 = vadd.f32 %v665, %v666
      %v668 = vrot.slane %v667, 1
      %v669 = vadd.f32 %v667, %v668
      %v670 = vcvt.s32.f32 %v649
      %v671 = vcvt.s32.f32 %v650
      %v672 = vsel %vm535, %v670, 0.0
      %v673 = vsel %vm535, %v671, 0.0
      %v674 = vadd.f32 %v672, %v673
      %v675 = vrot.slane %v674, 4
      %v676 = vadd.f32 %v674, %v675
      %v677 = vrot.slane %v676, 2
      %v678 = vadd.f32 %v676, %v677
      %v679 = vrot.slane %v678, 1
      %v680 = vadd.f32 %v678, %v679
      %vm681 = vcmp.eq.s32.totalorder %v508, 5
      %vm682 = vcmp.eq.s32.totalorder %v509, 5
      %v683 = vsel %vm681, 1, 0
      %v684 = vsel %vm682, 1, 0
      %685 = vset.pattern.permute.xlu0 0
      %686 = vperm.xlu0 %685, %v683
      %v687 = vpop.permute.xlu0 %686
      %688 = vset.pattern.permute.xlu0 0
      %689 = vperm.xlu0 %688, %v684
      %v690 = vpop.permute.xlu0 %689
      %vm691 = vcmp.eq.s32.totalorder %v687, 1
      %vm692 = vcmp.eq.s32.totalorder %v690, 1
      %v693 = vsel %vm691, %v506, 0.0
      %v694 = vsel %vm692, %v507, 0.0
      %v695 = vsel %vm354, %v693, 0.0
      %v696 = vsel %vm354, %v694, 0.0
      %v697 = vadd.f32 %v695, %v696
      %v698 = vrot.slane %v697, 4
      %v699 = vadd.f32 %v697, %v698
      %v700 = vrot.slane %v699, 2
      %v701 = vadd.f32 %v699, %v700
      %v702 = vrot.slane %v701, 1
      %v703 = vadd.f32 %v701, %v702
      %v704 = vcvt.s32.f32 %v683
      %v705 = vcvt.s32.f32 %v684
      %v706 = vsel %vm535, %v704, 0.0
      %v707 = vsel %vm535, %v705, 0.0
      %v708 = vadd.f32 %v706, %v707
      %v709 = vrot.slane %v708, 4
      %v710 = vadd.f32 %v708, %v709
      %v711 = vrot.slane %v710, 2
      %v712 = vadd.f32 %v710, %v711
      %v713 = vrot.slane %v712, 1
      %v714 = vadd.f32 %v712, %v713
      %vm715 = vcmp.eq.s32.totalorder %v508, 6
      %vm716 = vcmp.eq.s32.totalorder %v509, 6
      %v717 = vsel %vm715, 1, 0
      %v718 = vsel %vm716, 1, 0
      %719 = vset.pattern.permute.xlu0 0
      %720 = vperm.xlu0 %719, %v717
      %v721 = vpop.permute.xlu0 %720
      %722 = vset.pattern.permute.xlu0 0
      %723 = vperm.xlu0 %722, %v718
      %v724 = vpop.permute.xlu0 %723
      %vm725 = vcmp.eq.s32.totalorder %v721, 1
      %vm726 = vcmp.eq.s32.totalorder %v724, 1
      %v727 = vsel %vm725, %v506, 0.0
      %v728 = vsel %vm726, %v507, 0.0
      %v729 = vsel %vm354, %v727, 0.0
      %v730 = vsel %vm354, %v728, 0.0
      %v731 = vadd.f32 %v729, %v730
      %v732 = vrot.slane %v731, 4
      %v733 = vadd.f32 %v731, %v732
      %v734 = vrot.slane %v733, 2
      %v735 = vadd.f32 %v733, %v734
      %v736 = vrot.slane %v735, 1
      %v737 = vadd.f32 %v735, %v736
      %v738 = vcvt.s32.f32 %v717
      %v739 = vcvt.s32.f32 %v718
      %v740 = vsel %vm535, %v738, 0.0
      %v741 = vsel %vm535, %v739, 0.0
      %v742 = vadd.f32 %v740, %v741
      %v743 = vrot.slane %v742, 4
      %v744 = vadd.f32 %v742, %v743
      %v745 = vrot.slane %v744, 2
      %v746 = vadd.f32 %v744, %v745
      %v747 = vrot.slane %v746, 1
      %v748 = vadd.f32 %v746, %v747
      %vm749 = vcmp.eq.s32.totalorder %v508, 7
      %vm750 = vcmp.eq.s32.totalorder %v509, 7
      %v751 = vsel %vm749, 1, 0
      %v752 = vsel %vm750, 1, 0
      %753 = vset.pattern.permute.xlu0 0
      %754 = vperm.xlu0 %753, %v751
      %v755 = vpop.permute.xlu0 %754
      %756 = vset.pattern.permute.xlu0 0
      %757 = vperm.xlu0 %756, %v752
      %v758 = vpop.permute.xlu0 %757
      %vm759 = vcmp.eq.s32.totalorder %v755, 1
      %vm760 = vcmp.eq.s32.totalorder %v758, 1
      %v761 = vsel %vm759, %v506, 0.0
      %v762 = vsel %vm760, %v507, 0.0
      %v763 = vsel %vm354, %v761, 0.0
      %v764 = vsel %vm354, %v762, 0.0
      %v765 = vadd.f32 %v763, %v764
      %v766 = vrot.slane %v765, 4
      %v767 = vadd.f32 %v765, %v766
      %v768 = vrot.slane %v767, 2
      %v769 = vadd.f32 %v767, %v768
      %v770 = vrot.slane %v769, 1
      %v771 = vadd.f32 %v769, %v770
      %v772 = vcvt.s32.f32 %v751
      %v773 = vcvt.s32.f32 %v752
      %v774 = vsel %vm535, %v772, 0.0
      %v775 = vsel %vm535, %v773, 0.0
      %v776 = vadd.f32 %v774, %v775
      %v777 = vrot.slane %v776, 4
      %v778 = vadd.f32 %v776, %v777
      %v779 = vrot.slane %v778, 2
      %v780 = vadd.f32 %v778, %v779
      %v781 = vrot.slane %v780, 1
      %v782 = vadd.f32 %v780, %v781
      %v783 = vld [vmem:[#allocation2] sm:$0xff]
      %vm784 = vcmask 1040384
      %v785 = vsel %vm784, %v532, %v567
      %vm786 = vcmask 1041408
      %v787 = vsel %vm786, %v785, %v601
      %vm788 = vcmask 1042432
      %v789 = vsel %vm788, %v787, %v635
      %vm790 = vcmask 1043456
      %v791 = vsel %vm790, %v789, %v669
      %vm792 = vcmask 1044480
      %v793 = vsel %vm792, %v791, %v703
      %vm794 = vcmask 1045504
      %v795 = vsel %vm794, %v793, %v737
      %vm796 = vcmask 1046528
      %v797 = vsel %vm796, %v795, %v771
      %v798 = vadd.f32 %v783, %v797
      %799 = vst.msk [vmem:[#allocation2] sm:$0xff] %vm354, %v798
      %v800 = vld [vmem:[#allocation3] sm:$0xff]
      %v801 = vsel %vm784, %v544, %v578
      %v802 = vsel %vm786, %v801, %v612
      %v803 = vsel %vm788, %v802, %v646
      %v804 = vsel %vm790, %v803, %v680
      %v805 = vsel %vm792, %v804, %v714
      %v806 = vsel %vm794, %v805, %v748
      %v807 = vsel %vm796, %v806, %v782
      %v808 = vadd.f32 %v800, %v807
      %809 = vst.msk [vmem:[#allocation3] sm:$0xff] %vm535, %v808
      %p810 = scmp.eq.s32.totalorder %s19, 3
      // Predicated region
      $region57: #{tpu_custom_call.1} parent=51 // pred_check
        %p811 = pneg %p810
      $region58: #{tpu_custom_call.1} parent=51 // pred_check_branch
        %813 = sbr.rel (%p811) target = $region60
      $region59: #{tpu_custom_call.1} parent=51 // pred_region
        %v814 = vld [vmem:[#allocation2] sm:$0xff]
        %v815 = vld [vmem:[#allocation3] sm:$0xff]
        %v816 = vmax.f32 %v815, 1.0
        %818 = vset.pattern.permute.xlu0 0
        %819 = vperm.xlu0 %818, %v816
        %v820 = vpop.permute.xlu0 %819
        %v822 = vrcp.pop %v820
        %v823 = vmul.f32 %v814, %v822
        %v824 = vld [vmem:[%s6] sm:$0xff]
        %v825 = vld [vmem:[%s6 + $0x8] sm:$0xff]
        %v826 = vld [vmem:[%s6 + $0x10] sm:$0xff]
        %v827 = vld [vmem:[%s6 + $0x18] sm:$0xff]
        %v828 = vld [vmem:[%s7] sm:$0x1]
        %v830 = vlaneseq
        %v831 = vshrl.u32 %v830, 7
        %v832 = vsub.s32 0, %v831
        %v833 = vrot.slane %v828, %v832
        %v836 = vsel %vm354, %v823, 0
        %838 = vmatprep.subr.mxu0 0.0
        %839 = vmatpush1.msra.mxu0 0.0
        %840 = vmatprep.subr.mxu0 0.0
        %841 = vmatpush1.msra.mxu0 0.0
        %842 = vmatprep.subr.mxu0 0.0
        %843 = vmatpush1.msra.mxu0 0.0
        %844 = vmatprep.subr.mxu0 0.0
        %845 = vmatpush1.msra.mxu0 0.0
        %846 = vmatprep.subr.mxu0 0.0
        %847 = vmatpush1.msra.mxu0 0.0
        %848 = vmatprep.subr.mxu0 0.0
        %849 = vmatpush1.msra.mxu0 0.0
        %850 = vmatprep.subr.mxu0 0.0
        %851 = vmatpush1.msra.mxu0 0.0
        %852 = vmatprep.subr.mxu0 0.0
        %853 = vmatpush1.msra.mxu0 0.0
        %854 = vmatprep.subr.mxu0 0.0
        %855 = vmatpush1.msra.mxu0 0.0
        %856 = vmatprep.subr.mxu0 0.0
        %857 = vmatpush1.msra.mxu0 0.0
        %858 = vmatprep.subr.mxu0 0.0
        %859 = vmatpush1.msra.mxu0 0.0
        %860 = vmatprep.subr.mxu0 0.0
        %861 = vmatpush1.msra.mxu0 0.0
        %862 = vmatprep.subr.mxu0 0.0
        %863 = vmatpush1.msra.mxu0 %v827
        %864 = vmatprep.subr.mxu0 0.0
        %865 = vmatpush1.msra.mxu0 %v826
        %866 = vmatprep.subr.mxu0 0.0
        %867 = vmatpush1.msra.mxu0 %v825
        %868 = vmatprep.subr.mxu0 0.0
        %869 = vmatpush1.msra.mxu0 %v824
        %870 = vmatprep.subr.mxu0 0.0
        %871 = vmatpush2.msra.mxu0 0.0
        %872 = vmatprep.subr.mxu0 0.0
        %873 = vmatpush2.msra.mxu0 0.0
        %874 = vmatprep.subr.mxu0 0.0
        %875 = vmatpush2.msra.mxu0 0.0
        %876 = vmatprep.subr.mxu0 0.0
        %877 = vmatpush2.msra.mxu0 0.0
        %878 = vmatprep.subr.mxu0 0.0
        %879 = vmatpush2.msra.mxu0 0.0
        %880 = vmatprep.subr.mxu0 0.0
        %881 = vmatpush2.msra.mxu0 0.0
        %882 = vmatprep.subr.mxu0 0.0
        %883 = vmatpush2.msra.mxu0 0.0
        %884 = vmatprep.subr.mxu0 0.0
        %885 = vmatpush2.msra.mxu0 0.0
        %886 = vmatprep.subr.mxu0 0.0
        %887 = vmatpush2.msra.mxu0 0.0
        %888 = vmatprep.subr.mxu0 0.0
        %889 = vmatpush2.msra.mxu0 0.0
        %890 = vmatprep.subr.mxu0 0.0
        %891 = vmatpush2.msra.mxu0 0.0
        %892 = vmatprep.subr.mxu0 0.0
        %893 = vmatpush2.msra.mxu0 0.0
        %894 = vmatprep.subr.mxu0 0.0
        %895 = vmatpush2.msra.mxu0 0.0
        %896 = vmatprep.subr.mxu0 0.0
        %897 = vmatpush2.msra.mxu0 0.0
        %898 = vmatprep.subr.mxu0 0.0
        %899 = vmatpush2.msra.mxu0 0.0
        %900 = vmatprep.subr.mxu0 0.0
        %901 = vmatpush2.msra.mxu0 0.0
        %902 = vmatprep.mubr.f32.mxu0 0.0
        %903 = vmatmul.mubr.f32.gmra.mxu0 %v836
        %v904 = vpop.f32.mrf.mxu0
        %v905 = vadd.f32 %v833, %v904
        %v906 = vpop.f32.mrf.mxu0
        %907 = vdwg.mxu0
        %vm908 = vcmask 15360
        %v909 = vsel %vm908, %v905, -inf
        %910 = vmax.xlane.f32.xlu0 %v909
        %v911 = vpop.xlane.xlu0 %910
        %v912 = vsub.f32 %v905, %v911
        %v913 = vmul.f32 %v912, 1.442695
        %v914 = vpow.pop %v913
        %v915 = vsel %vm908, %v914, 0.0
        %916 = vadd.xlane.f32.xlu0 %v915
        %v917 = vpop.xlane.xlu0 %916
        %v918 = vrcp.pop %v917
        %v919 = vmul.f32 %v914, %v918
        %920 = vst.msk [vmem:[%s8] sm:$0xff] %vm908, %v919
      $region60: #{tpu_custom_call.1} parent=51 // pred_fallthru
        _
      // Predicated region
      $region61: #{tpu_custom_call.1} parent=51 // pred_check
        %p921 = pneg %p210
      $region62: #{tpu_custom_call.1} parent=51 // pred_check_branch
        %923 = sbr.rel (%p921) target = $region64
      $region63: #{tpu_custom_call.1} parent=51 // pred_region
        _
      $region64: #{tpu_custom_call.1} parent=51 // pred_fallthru
        _
      // Predicated region
      $region65: #{tpu_custom_call.1} parent=51 // pred_check
        %p924 = pneg %p210
      $region66: #{tpu_custom_call.1} parent=51 // pred_check_branch
        %926 = sbr.rel (%p924) target = $region68
      $region67: #{tpu_custom_call.1} parent=51 // pred_region
        _
      $region68: #{tpu_custom_call.1} parent=51 // pred_fallthru
        _
    $region52: #{tpu_custom_call.1} parent=5 // pred_fallthru
      _
    %p927 = scmp.le.s32.totalorder 2, %s14
    // Predicated region
    $region69: #{tpu_custom_call.1} parent=5 // pred_check
      %p928 = pneg %p927
    $region70: #{tpu_custom_call.1} parent=5 // pred_check_branch
      %930 = sbr.rel (%p928) target = $region72
    $region71: #{tpu_custom_call.1} parent=5 // pred_region
      %s931 = ssub.s32 %s14, 2
    $region72: #{tpu_custom_call.1} parent=5 // pred_fallthru
      _
  $region6: #{tpu_custom_call.1} parent=0 // loop_footer
    %s18 = sadd.s32 1, %s14
  $region7: #{tpu_custom_call.1} parent=0 // loop_footer_branch
    %13 = sbr.rel target = $region3
  $region8: #{tpu_custom_call.1} parent=0 // loop_exit
    _

</llo_original>
